<compile_context>
chip_gen: v5e
topology: v5e:2x2
jax: 0.10.0
libtpu: 0.0.40
codegen_flags: <defaults>
</compile_context>

<pallas_src>
import jax
import jax.numpy as jnp
from jax.experimental import pallas as pl
from jax.experimental.pallas import tpu as pltpu


# ---------------------------------------------------------------------------
# small helpers
# ---------------------------------------------------------------------------
def _round_up(x, m):
    return ((x + m - 1) // m) * m


def _cdiv(a, b):
    return -(-a // b)


def _vmem_limit(streamed_bytes, resident_bytes):
    # double-buffered streamed tiles + (conservatively) double-buffered
    # resident operands, plus headroom. Clamp below v7x's 64 MiB physical.
    need = 2 * streamed_bytes + 2 * resident_bytes
    need = int(need * 1.25) + (1 << 20)
    return max(min(need, 60 * 1024 * 1024), 16 * 1024 * 1024)


_MEGACORE_SPLIT = 256  # if a single tile would hold >= 2*this rows, split in 2


# ---------------------------------------------------------------------------
# One-time parameter preparation (outside the per-step hot path)
# ---------------------------------------------------------------------------
def prepare_ssm_params(params, lane=128, weight_dtype=None):
    """Transpose weights to (in, out), zero-pad the output dim to a lane-dense
    multiple of 128, pre-sum biases, and build the (n_pad, n_pad) padded state
    transition used by the fused rollout. All done once, off the hot path.

    params follow the PyTorch nn.Linear convention: W is (out, in), b is (out,).
    Keys: 'Wx','bx','Wu','bu' and optionally 'Wd','bd'.
    """
    nx = params["Wx"].shape[0]
    nu = params["Wu"].shape[1]
    has_d = "Wd" in params
    nd = params["Wd"].shape[1] if has_d else 0
    n_pad = _round_up(nx, lane)

    def _wt(w):  # (out, in) -> (in, n_pad); padded output columns are zero
        wt = jnp.pad(w.T, ((0, 0), (0, n_pad - nx)))
        return wt.astype(weight_dtype) if weight_dtype is not None else wt

    def _b(*bs):  # pre-summed bias, padded, (1, n_pad) f32
        b = bs[0]
        for extra in bs[1:]:
            b = b + extra
        return jnp.pad(b, (0, n_pad - nx)).reshape(1, n_pad).astype(jnp.float32)

    prep = dict(nx=nx, nu=nu, nd=nd, n_pad=n_pad, has_d=has_d)
    prep["Wx"] = _wt(params["Wx"])                       # (nx, n_pad)
    prep["Wu"] = _wt(params["Wu"])                       # (nu, n_pad)
    prep["b_xu"] = _b(params["bx"], params["bu"])
    # square, fully padded state transition for the fused rollout:
    # padded rows AND columns are zero, so padded state entries stay zero.
    prep["Wx_sq"] = jnp.pad(prep["Wx"], ((0, n_pad - nx), (0, 0)))  # (n_pad, n_pad)
    if has_d:
        prep["Wd"] = _wt(params["Wd"])                   # (nd, n_pad)
        prep["b_xud"] = _b(params["bx"], params["bu"], params["bd"])
    return prep


# ---------------------------------------------------------------------------
# single-step kernel: out = x@Wx + u@Wu (+ d@Wd) + b     (W already transposed)
# ---------------------------------------------------------------------------
def _make_step_kernel(has_d):
    if has_d:
        def kernel(x_ref, u_ref, d_ref, wx_ref, wu_ref, wd_ref, b_ref, out_ref):
            acc = jnp.dot(x_ref[...], wx_ref[...], preferred_element_type=jnp.float32)
            acc = acc + jnp.dot(u_ref[...], wu_ref[...], preferred_element_type=jnp.float32)
            acc = acc + jnp.dot(d_ref[...], wd_ref[...], preferred_element_type=jnp.float32)
            out_ref[...] = (acc + b_ref[...]).astype(out_ref.dtype)
    else:
        def kernel(x_ref, u_ref, wx_ref, wu_ref, b_ref, out_ref):
            acc = jnp.dot(x_ref[...], wx_ref[...], preferred_element_type=jnp.float32)
            acc = acc + jnp.dot(u_ref[...], wu_ref[...], preferred_element_type=jnp.float32)
            out_ref[...] = (acc + b_ref[...]).astype(out_ref.dtype)
    return kernel


def _pick_n_tile(n_pad, max_n_tile):
    """Largest multiple of 128 that divides n_pad and is <= max_n_tile."""
    if n_pad <= max_n_tile:
        return n_pad
    best = 128
    t = 128
    while t <= max_n_tile:
        if n_pad % t == 0:
            best = t
        t += 128
    return best


def ssm_forward(prep, x, u, d=None, *, max_batch_tile=1024, max_n_tile=1024):
    """Single SSM step. x: [B, nx], u: [B, nu], d: [B, nd] or None -> [B, nx]."""
    assert x.ndim == 2 and u.ndim == 2
    B = x.shape[0]
    nx, n_pad = prep["nx"], prep["n_pad"]
    has_d = (d is not None) and prep["has_d"]
    if has_d:
        assert d.ndim == 2
        b_vec = prep["b_xud"]
    else:
        b_vec = prep["b_xu"]

    # ----- batch tiling: balanced (no ~2x padding at awkward B) -----
    b8 = _round_up(B, 8)
    n_bt = _cdiv(b8, max_batch_tile)
    if n_bt == 1 and b8 >= 2 * _MEGACORE_SPLIT:
        n_bt = 2                                  # give v7x's second TC work
    if n_bt == 1:
        tb, b_pad = B, B                          # full-array block: zero padding
    else:
        tb = _round_up(_cdiv(b8, n_bt), 8)
        b_pad = tb * n_bt
    if b_pad != B:
        pad = ((0, b_pad - B), (0, 0))
        x = jnp.pad(x, pad)
        u = jnp.pad(u, pad)
        if has_d:
            d = jnp.pad(d, pad)

    # ----- N tiling: only matters for large nx (v7x 64 MiB VMEM) -----
    tn = _pick_n_tile(n_pad, max_n_tile)
    n_nt = n_pad // tn
    grid = (n_bt, n_nt)

    # operands / specs in kernel order: x, u, (d,), Wx, Wu, (Wd,), b
    operands = [x, u]
    in_specs = [
        pl.BlockSpec((tb, x.shape[1]), lambda i, j: (i, 0)),
        pl.BlockSpec((tb, u.shape[1]), lambda i, j: (i, 0)),
    ]
    if has_d:
        operands.append(d)
        in_specs.append(pl.BlockSpec((tb, d.shape[1]), lambda i, j: (i, 0)))
    w_list = [prep["Wx"], prep["Wu"]] + ([prep["Wd"]] if has_d else [])
    for w in w_list:
        operands.append(w)
        in_specs.append(pl.BlockSpec((w.shape[0], tn), lambda i, j: (0, j)))
    operands.append(b_vec)
    in_specs.append(pl.BlockSpec((1, tn), lambda i, j: (0, j)))

    # ----- explicit VMEM budget from the real footprint -----
    a_bytes = jnp.dtype(x.dtype).itemsize
    w_bytes = jnp.dtype(prep["Wx"].dtype).itemsize
    k_act = x.shape[1] + u.shape[1] + (d.shape[1] if has_d else 0)
    streamed = tb * k_act * a_bytes + tb * tn * a_bytes          # acts + out tile
    resident = (sum(w.shape[0] for w in w_list) * tn) * w_bytes + tn * 4
    vmem_limit = _vmem_limit(streamed, resident)

    out = pl.pallas_call(
        _make_step_kernel(has_d),
        out_shape=jax.ShapeDtypeStruct((b_pad, n_pad), x.dtype),
        grid_spec=pltpu.PrefetchScalarGridSpec(
            num_scalar_prefetch=0,
            grid=grid,
            in_specs=in_specs,
            out_specs=pl.BlockSpec((tb, tn), lambda i, j: (i, j)),
        ),
        compiler_params=pltpu.CompilerParams(
            dimension_semantics=("parallel", "parallel"),
            vmem_limit_bytes=vmem_limit,
        ),
    )(*operands)

    return out[:B, :nx]


# ---------------------------------------------------------------------------
# fused T-step rollout kernel: weights resident, state in VMEM scratch
# ---------------------------------------------------------------------------
def _make_rollout_kernel(has_d):
    if has_d:
        def kernel(x0_ref, u_ref, d_ref, wx_ref, wu_ref, wd_ref, b_ref, xs_ref, x_sc):
            t = pl.program_id(0)

            @pl.when(t == 0)
            def _():
                x_sc[...] = x0_ref[...].astype(jnp.float32)

            acc = jnp.dot(x_sc[...], wx_ref[...], preferred_element_type=jnp.float32)
            acc = acc + jnp.dot(u_ref[0], wu_ref[...], preferred_element_type=jnp.float32)
            acc = acc + jnp.dot(d_ref[0], wd_ref[...], preferred_element_type=jnp.float32)
            acc = acc + b_ref[...]
            x_sc[...] = acc                      # state stays lane-dense (n_pad)
            xs_ref[0] = acc.astype(xs_ref.dtype)
    else:
        def kernel(x0_ref, u_ref, wx_ref, wu_ref, b_ref, xs_ref, x_sc):
            t = pl.program_id(0)

            @pl.when(t == 0)
            def _():
                x_sc[...] = x0_ref[...].astype(jnp.float32)

            acc = jnp.dot(x_sc[...], wx_ref[...], preferred_element_type=jnp.float32)
            acc = acc + jnp.dot(u_ref[0], wu_ref[...], preferred_element_type=jnp.float32)
            acc = acc + b_ref[...]
            x_sc[...] = acc
            xs_ref[0] = acc.astype(xs_ref.dtype)
    return kernel


def ssm_rollout(prep, x0, u_seq, d_seq=None):
    """Fused rollout x_{k+1} = fx(x_k)+fu(u_k)(+fd(d_k)), k = 0..T-1.

    x0: [B, nx], u_seq: [T, B, nu], d_seq: [T, B, nd] or None.
    Returns the trajectory x_{1..T}: [T, B, nx]. Weights are DMA'd once.
    """
    assert x0.ndim == 2 and u_seq.ndim == 3
    T, B = u_seq.shape[0], x0.shape[0]
    nx, nu, nd, n_pad = prep["nx"], prep["nu"], prep["nd"], prep["n_pad"]
    has_d = (d_seq is not None) and prep["has_d"]
    b8 = _round_up(B, 8)

    # lane-dense, zero-padded initial state; padding stays exactly zero because
    # the padded rows/cols of Wx_sq and padded bias entries are zero.
    x0p = jnp.zeros((b8, n_pad), x0.dtype).at[:B, :nx].set(x0)
    pad_b = ((0, 0), (0, b8 - B), (0, 0))
    u_p = jnp.pad(u_seq, pad_b) if b8 != B else u_seq

    operands = [x0p, u_p]
    in_specs = [
        pl.BlockSpec((b8, n_pad), lambda t: (0, 0)),          # x0 (resident)
        pl.BlockSpec((1, b8, nu), lambda t: (t, 0, 0)),       # u_t streamed
    ]
    if has_d:
        d_p = jnp.pad(d_seq, pad_b) if b8 != B else d_seq
        operands.append(d_p)
        in_specs.append(pl.BlockSpec((1, b8, nd), lambda t: (t, 0, 0)))
        w_list = [prep["Wx_sq"], prep["Wu"], prep["Wd"]]
        b_vec = prep["b_xud"]
    else:
        w_list = [prep["Wx_sq"], prep["Wu"]]
        b_vec = prep["b_xu"]
    for w in w_list:
        operands.append(w)
        in_specs.append(pl.BlockSpec(w.shape, lambda t: (0, 0)))  # resident
    operands.append(b_vec)
    in_specs.append(pl.BlockSpec((1, n_pad), lambda t: (0, 0)))   # resident

    a_bytes = jnp.dtype(x0.dtype).itemsize
    w_bytes = jnp.dtype(prep["Wx_sq"].dtype).itemsize
    streamed = b8 * (nu + (nd if has_d else 0)) * a_bytes + b8 * n_pad * a_bytes
    resident = (sum(w.shape[0] * w.shape[1] for w in w_list) + n_pad) * w_bytes \
               + 2 * b8 * n_pad * 4                    # x0 + f32 state scratch
    vmem_limit = _vmem_limit(streamed, resident)

    xs = pl.pallas_call(
        _make_rollout_kernel(has_d),
        out_shape=jax.ShapeDtypeStruct((T, b8, n_pad), x0.dtype),
        grid_spec=pltpu.PrefetchScalarGridSpec(
            num_scalar_prefetch=0,
            grid=(T,),
            in_specs=in_specs,
            out_specs=pl.BlockSpec((1, b8, n_pad), lambda t: (t, 0, 0)),
            scratch_shapes=[pltpu.VMEM((b8, n_pad), jnp.float32)],
        ),
        compiler_params=pltpu.CompilerParams(
            dimension_semantics=("arbitrary",),   # sequential recurrence
            vmem_limit_bytes=vmem_limit,
        ),
    )(*operands)

    return xs[:, :B, :nx]


# ---------------------------------------------------------------------------
# Pure-JAX references (mirror the PyTorch module exactly)
# ---------------------------------------------------------------------------
def ssm_reference(params, x, u, d=None):
    y = x @ params["Wx"].T + params["bx"] + u @ params["Wu"].T + params["bu"]
    if d is not None and "Wd" in params:
        y = y + d @ params["Wd"].T + params["bd"]
    return y


def ssm_rollout_reference(params, x0, u_seq, d_seq=None):
    x = x0
    outs = []
    for t in range(u_seq.shape[0]):
        x = ssm_reference(params, x, u_seq[t], None if d_seq is None else d_seq[t])
        outs.append(x)
    return jnp.stack(outs, axis=0)


if __name__ == "__main__":
    # Small shapes consistent with the module's flat [batch, features] inputs.
    B, nx, nu, nd, T = 8, 32, 16, 8, 6
    dtype = jnp.float32

    key = jax.random.PRNGKey(0)
    ks = jax.random.split(key, 11)

    x = jax.random.normal(ks[0], (B, nx), dtype)
    u = jax.random.normal(ks[1], (B, nu), dtype)
    d = jax.random.normal(ks[2], (B, nd), dtype)
    u_seq = jax.random.normal(ks[3], (T, B, nu), dtype)
    d_seq = jax.random.normal(ks[4], (T, B, nd), dtype)

    # nn.Linear-style params: W = (out, in), b = (out,)
    params = {
        "Wx": jax.random.normal(ks[5], (nx, nx), dtype) * 0.1,
        "bx": jax.random.normal(ks[6], (nx,), dtype) * 0.1,
        "Wu": jax.random.normal(ks[7], (nx, nu), dtype) * 0.1,
        "bu": jax.random.normal(ks[8], (nx,), dtype) * 0.1,
        "Wd": jax.random.normal(ks[9], (nx, nd), dtype) * 0.1,
        "bd": jax.random.normal(ks[10], (nx,), dtype) * 0.1,
    }

    # One-time prep (transpose / pad / bias-sum); hot path is just pallas_call.
    prep = prepare_ssm_params(params)

    # Single step with disturbance.
    out = jax.block_until_ready(ssm_forward(prep, x, u, d))
    ref = ssm_reference(params, x, u, d)
    assert out.shape == (B, nx)
    assert jnp.allclose(out, ref, atol=1e-5, rtol=1e-5), \
        float(jnp.max(jnp.abs(out - ref)))

    # Single step, no disturbance (fd present but d=None -> skipped, as in module).
    out2 = jax.block_until_ready(ssm_forward(prep, x, u, None))
    ref2 = ssm_reference(params, x, u, None)
    assert jnp.allclose(out2, ref2, atol=1e-5, rtol=1e-5), \
        float(jnp.max(jnp.abs(out2 - ref2)))

    # Fused T-step rollout (weights DMA'd once, state resident in VMEM).
    xs = jax.block_until_ready(ssm_rollout(prep, x, u_seq, d_seq))
    xs_ref = ssm_rollout_reference(params, x, u_seq, d_seq)
    assert xs.shape == (T, B, nx)
    assert jnp.allclose(xs, xs_ref, atol=1e-4, rtol=1e-4), \
        float(jnp.max(jnp.abs(xs - xs_ref)))

    print("KERNEL_OK")
</pallas_src>

<mosaic_0001>
module attributes {stable_mosaic.version = 11 : i64} {
  func.func @kernel(%arg0: i32, %arg1: i32, %arg2: memref<8x32xf32, #tpu.memory_space<vmem>>, %arg3: memref<8x16xf32, #tpu.memory_space<vmem>>, %arg4: memref<8x8xf32, #tpu.memory_space<vmem>>, %arg5: memref<32x128xf32, #tpu.memory_space<vmem>>, %arg6: memref<16x128xf32, #tpu.memory_space<vmem>>, %arg7: memref<8x128xf32, #tpu.memory_space<vmem>>, %arg8: memref<1x128xf32, #tpu.memory_space<vmem>>, %arg9: memref<8x128xf32, #tpu.memory_space<vmem>>) attributes {dimension_semantics = [#tpu.dimension_semantics<parallel>, #tpu.dimension_semantics<parallel>], iteration_bounds = array<i64: 1, 1>, scalar_prefetch = 0 : i64, scratch_operands = 0 : i64, tpu.core_type = #tpu.core_type<tc>, window_params = [{transform_indices = @transform_0, window_bounds = array<i64: 8, 32>}, {transform_indices = @transform_1, window_bounds = array<i64: 8, 16>}, {transform_indices = @transform_2, window_bounds = array<i64: 8, 8>}, {transform_indices = @transform_3, window_bounds = array<i64: 32, 128>}, {transform_indices = @transform_4, window_bounds = array<i64: 16, 128>}, {transform_indices = @transform_5, window_bounds = array<i64: 8, 128>}, {transform_indices = @transform_6, window_bounds = array<i64: 1, 128>}, {transform_indices = @transform_7, window_bounds = array<i64: 8, 128>}]} {
    %c0 = arith.constant 0 : index
    %c0_0 = arith.constant 0 : index
    %0 = vector.load %arg2[%c0, %c0_0] : memref<8x32xf32, #tpu.memory_space<vmem>>, vector<8x32xf32>
    %c0_1 = arith.constant 0 : index
    %c0_2 = arith.constant 0 : index
    %1 = vector.load %arg5[%c0_1, %c0_2] : memref<32x128xf32, #tpu.memory_space<vmem>>, vector<32x128xf32>
    %cst = arith.constant dense<0.000000e+00> : vector<8x128xf32>
    %2 = tpu.matmul %0, %1, %cst {dimension_numbers = #tpu.dot_dimension_numbers<[1], [0], [0], [1], [0, 0, 1, 1], [], []>} : vector<8x32xf32>, vector<32x128xf32>, vector<8x128xf32> -> vector<8x128xf32>
    %c0_3 = arith.constant 0 : index
    %c0_4 = arith.constant 0 : index
    %3 = vector.load %arg3[%c0_3, %c0_4] : memref<8x16xf32, #tpu.memory_space<vmem>>, vector<8x16xf32>
    %c0_5 = arith.constant 0 : index
    %c0_6 = arith.constant 0 : index
    %4 = vector.load %arg6[%c0_5, %c0_6] : memref<16x128xf32, #tpu.memory_space<vmem>>, vector<16x128xf32>
    %cst_7 = arith.constant dense<0.000000e+00> : vector<8x128xf32>
    %5 = tpu.matmul %3, %4, %cst_7 {dimension_numbers = #tpu.dot_dimension_numbers<[1], [0], [0], [1], [0, 0, 1, 1], [], []>} : vector<8x16xf32>, vector<16x128xf32>, vector<8x128xf32> -> vector<8x128xf32>
    %6 = arith.addf %2, %5 : vector<8x128xf32>
    %c0_8 = arith.constant 0 : index
    %c0_9 = arith.constant 0 : index
    %7 = vector.load %arg4[%c0_8, %c0_9] : memref<8x8xf32, #tpu.memory_space<vmem>>, vector<8x8xf32>
    %c0_10 = arith.constant 0 : index
    %c0_11 = arith.constant 0 : index
    %8 = vector.load %arg7[%c0_10, %c0_11] : memref<8x128xf32, #tpu.memory_space<vmem>>, vector<8x128xf32>
    %cst_12 = arith.constant dense<0.000000e+00> : vector<8x128xf32>
    %9 = tpu.matmul %7, %8, %cst_12 {dimension_numbers = #tpu.dot_dimension_numbers<[1], [0], [0], [1], [0, 0, 1, 1], [], []>} : vector<8x8xf32>, vector<8x128xf32>, vector<8x128xf32> -> vector<8x128xf32>
    %10 = arith.addf %6, %9 : vector<8x128xf32>
    %c0_13 = arith.constant 0 : index
    %c0_14 = arith.constant 0 : index
    %11 = vector.load %arg8[%c0_13, %c0_14] : memref<1x128xf32, #tpu.memory_space<vmem>>, vector<1x128xf32>
    %12 = vector.broadcast %11 : vector<1x128xf32> to vector<8x128xf32>
    %13 = arith.addf %10, %12 : vector<8x128xf32>
    %c0_15 = arith.constant 0 : index
    %c0_16 = arith.constant 0 : index
    %14 = vector.load %arg9[%c0_15, %c0_16] : memref<8x128xf32, #tpu.memory_space<vmem>>, vector<8x128xf32>
    tpu.vector_store %arg9[%c0_15, %c0_16], %13 {strides = array<i32>} : memref<8x128xf32, #tpu.memory_space<vmem>>, vector<8x128xf32>,
    return
  }
  func.func @transform_0(%arg0: i32, %arg1: i32) -> (i32, i32) {
    %c0_i32 = arith.constant 0 : i32
    %c0_i32_0 = arith.constant 0 : i32
    return %arg0, %c0_i32 : i32, i32
  }
  func.func @transform_1(%arg0: i32, %arg1: i32) -> (i32, i32) {
    %c0_i32 = arith.constant 0 : i32
    %c0_i32_0 = arith.constant 0 : i32
    return %arg0, %c0_i32 : i32, i32
  }
  func.func @transform_2(%arg0: i32, %arg1: i32) -> (i32, i32) {
    %c0_i32 = arith.constant 0 : i32
    %c0_i32_0 = arith.constant 0 : i32
    return %arg0, %c0_i32 : i32, i32
  }
  func.func @transform_3(%arg0: i32, %arg1: i32) -> (i32, i32) {
    %c0_i32 = arith.constant 0 : i32
    %c0_i32_0 = arith.constant 0 : i32
    return %c0_i32, %arg1 : i32, i32
  }
  func.func @transform_4(%arg0: i32, %arg1: i32) -> (i32, i32) {
    %c0_i32 = arith.constant 0 : i32
    %c0_i32_0 = arith.constant 0 : i32
    return %c0_i32, %arg1 : i32, i32
  }
  func.func @transform_5(%arg0: i32, %arg1: i32) -> (i32, i32) {
    %c0_i32 = arith.constant 0 : i32
    %c0_i32_0 = arith.constant 0 : i32
    return %c0_i32, %arg1 : i32, i32
  }
  func.func @transform_6(%arg0: i32, %arg1: i32) -> (i32, i32) {
    %c0_i32 = arith.constant 0 : i32
    %c0_i32_0 = arith.constant 0 : i32
    return %c0_i32, %arg1 : i32, i32
  }
  func.func @transform_7(%arg0: i32, %arg1: i32) -> (i32, i32) {
    %c0_i32 = arith.constant 0 : i32
    return %arg0, %arg1 : i32, i32
  }
}

</mosaic_0001>

<llo_original>
// kernel: tpu_custom_call.1
$region0: #{tpu_custom_call.1}
  #allocation0 [shape = 'u32[]', space=smem, size = 0x4, offset = 0x4, fixed_abs, tag = 'smem constant byte address 0x4 - core index']
  #allocation1 [shape = 'u32[72,128]{1,0:T(1,128)}', space=vmem, size = 0x9000, scoped, tag = 'internal scratch']
  %s0 = inlined_call_operand.hbm [shape: f32[8,32], index: 0, kind: input, shape index: {}]
  %s1 = inlined_call_operand.hbm [shape: f32[8,16], index: 1, kind: input, shape index: {}]
  %s2 = inlined_call_operand.hbm [shape: f32[8,8], index: 2, kind: input, shape index: {}]
  %s3 = inlined_call_operand.hbm [shape: f32[32,128], index: 3, kind: input, shape index: {}]
  %s4 = inlined_call_operand.hbm [shape: f32[16,128], index: 4, kind: input, shape index: {}]
  %s5 = inlined_call_operand.hbm [shape: f32[8,128], index: 5, kind: input, shape index: {}]
  %s6 = inlined_call_operand.vmem [shape: f32[1,128], index: 6, kind: input, shape index: {}]
  %s7 = inlined_call_operand.hbm [shape: f32[8,128], index: 7, kind: output, shape index: {}]
  %s8 = sld [smem:[#allocation0]]
  $region62: #{tpu_custom_call.1} parent=0
    _
  %s10 = ssub.s32 1, %s8
  %s11 = scalar_select 0, %s10, %s8
  $region1: #{tpu_custom_call.1} parent=0
    #allocation2 [shape = 'u8[4096]{0}', space=vmem, size = 0x1000, scoped, tag = 'input window, operand 0, single buffered']
    #allocation3 [shape = 's32[1]{0}', space=sflag, size = 0x4, scoped, tag = 'scoped memory for tpu_custom_call.1']
    #allocation4 [shape = 's32[1]{0}', space=sflag, size = 0x4, scoped, tag = 'scoped memory for tpu_custom_call.1']
    #allocation5 [shape = 'u8[4096]{0}', space=vmem, size = 0x1000, scoped, tag = 'input window, operand 1, single buffered']
    #allocation6 [shape = 's32[1]{0}', space=sflag, size = 0x4, scoped, tag = 'scoped memory for tpu_custom_call.1']
    #allocation7 [shape = 'u8[4096]{0}', space=vmem, size = 0x1000, scoped, tag = 'input window, operand 2, single buffered']
    #allocation8 [shape = 'u8[16384]{0}', space=vmem, size = 0x4000, scoped, tag = 'input window, operand 3, single buffered']
    #allocation9 [shape = 's32[1]{0}', space=sflag, size = 0x4, scoped, tag = 'scoped memory for tpu_custom_call.1']
    #allocation10 [shape = 'u8[8192]{0}', space=vmem, size = 0x2000, scoped, tag = 'input window, operand 4, single buffered']
    #allocation11 [shape = 'u8[4096]{0}', space=vmem, size = 0x1000, scoped, tag = 'input window, operand 5, single buffered']
    #allocation12 [shape = 's32[1]{0}', space=sflag, size = 0x4, scoped, tag = 'scoped memory for tpu_custom_call.1']
    #allocation13 [shape = 'u8[4096]{0}', space=vmem, size = 0x1000, scoped, tag = 'output window, operand 0, single buffered']
    %12 = vsyncpa [#allocation3], 0
    %13 = vsyncpa [#allocation6], 0
    %14 = vsyncpa [#allocation9], 0
    %15 = vsyncpa [#allocation12], 0
    %16 = vsyncpa [#allocation4], 0
    // Predicated region
    $region2: #{tpu_custom_call.1} parent=1 // pred_check
      _
    $region3: #{tpu_custom_call.1} parent=1 // pred_check_branch
      %18 = sbr.rel (0) target = $region5
    $region4: #{tpu_custom_call.1} parent=1 // pred_region
      %20 = vsyncadd [#allocation3], 0
      %s22 = sshll.u32 %s0, 4
      %s23 = int_to_ptr.hbm [resolvable:$true] %s22
      %s24 = sshll.u32 [#allocation2], 4
      %s25 = int_to_ptr.vmem [resolvable:$true] %s24
      %27 = dma.hbm_to_vmem [thread:$0]  %s23, 128, %s25, [#allocation3]
    $region5: #{tpu_custom_call.1} parent=1 // pred_fallthru
      _
    // Predicated region
    $region6: #{tpu_custom_call.1} parent=1 // pred_check
      _
    $region7: #{tpu_custom_call.1} parent=1 // pred_check_branch
      %29 = sbr.rel (0) target = $region9
    $region8: #{tpu_custom_call.1} parent=1 // pred_region
      %31 = vsyncadd [#allocation6], 0
      %s33 = sshll.u32 %s1, 4
      %s34 = int_to_ptr.hbm [resolvable:$true] %s33
      %s35 = sshll.u32 [#allocation5], 4
      %s36 = int_to_ptr.vmem [resolvable:$true] %s35
      %38 = dma.hbm_to_vmem [thread:$0]  %s34, 128, %s36, [#allocation6]
    $region9: #{tpu_custom_call.1} parent=1 // pred_fallthru
      _
    // Predicated region
    $region10: #{tpu_custom_call.1} parent=1 // pred_check
      _
    $region11: #{tpu_custom_call.1} parent=1 // pred_check_branch
      %40 = sbr.rel (0) target = $region13
    $region12: #{tpu_custom_call.1} parent=1 // pred_region
      %42 = vsyncadd [#allocation6], 0
      %s44 = sshll.u32 %s2, 4
      %s45 = int_to_ptr.hbm [resolvable:$true] %s44
      %s46 = sshll.u32 [#allocation7], 4
      %s47 = int_to_ptr.vmem [resolvable:$true] %s46
      %49 = dma.hbm_to_vmem [thread:$0]  %s45, 128, %s47, [#allocation6]
    $region13: #{tpu_custom_call.1} parent=1 // pred_fallthru
      _
    // Predicated region
    $region14: #{tpu_custom_call.1} parent=1 // pred_check
      _
    $region15: #{tpu_custom_call.1} parent=1 // pred_check_branch
      %51 = sbr.rel (0) target = $region17
    $region16: #{tpu_custom_call.1} parent=1 // pred_region
      %53 = vsyncadd [#allocation9], 0
      %s54 = sshll.u32 %s3, 4
      %s55 = int_to_ptr.hbm [resolvable:$true] %s54
      %s56 = sshll.u32 [#allocation8], 4
      %s57 = int_to_ptr.vmem [resolvable:$true] %s56
      %62 = dma.hbm_to_vmem [thread:$0]  %s55, 512, %s57, [#allocation9], 128, 128, 8
    $region17: #{tpu_custom_call.1} parent=1 // pred_fallthru
      _
    // Predicated region
    $region18: #{tpu_custom_call.1} parent=1 // pred_check
      _
    $region19: #{tpu_custom_call.1} parent=1 // pred_check_branch
      %64 = sbr.rel (0) target = $region21
    $region20: #{tpu_custom_call.1} parent=1 // pred_region
      %66 = vsyncadd [#allocation9], 0
      %s67 = sshll.u32 %s4, 4
      %s68 = int_to_ptr.hbm [resolvable:$true] %s67
      %s69 = sshll.u32 [#allocation10], 4
      %s70 = int_to_ptr.vmem [resolvable:$true] %s69
      %75 = dma.hbm_to_vmem [thread:$0]  %s68, 256, %s70, [#allocation9], 128, 128, 8
    $region21: #{tpu_custom_call.1} parent=1 // pred_fallthru
      _
    // Predicated region
    $region22: #{tpu_custom_call.1} parent=1 // pred_check
      _
    $region23: #{tpu_custom_call.1} parent=1 // pred_check_branch
      %77 = sbr.rel (0) target = $region25
    $region24: #{tpu_custom_call.1} parent=1 // pred_region
      %79 = vsyncadd [#allocation12], 0
      %s81 = sshll.u32 %s5, 4
      %s82 = int_to_ptr.hbm [resolvable:$true] %s81
      %s83 = sshll.u32 [#allocation11], 4
      %s84 = int_to_ptr.vmem [resolvable:$true] %s83
      %86 = dma.hbm_to_vmem [thread:$0]  %s82, 128, %s84, [#allocation12]
    $region25: #{tpu_custom_call.1} parent=1 // pred_fallthru
      _
    // Predicated region
    $region26: #{tpu_custom_call.1} parent=1 // pred_check
      _
    $region27: #{tpu_custom_call.1} parent=1 // pred_check_branch
      %88 = sbr.rel (0) target = $region29
    $region28: #{tpu_custom_call.1} parent=1 // pred_region
      _
    $region29: #{tpu_custom_call.1} parent=1 // pred_fallthru
      _
    // Predicated region
    $region30: #{tpu_custom_call.1} parent=1 // pred_check
      _
    $region31: #{tpu_custom_call.1} parent=1 // pred_check_branch
      %90 = sbr.rel (0) target = $region33
    $region32: #{tpu_custom_call.1} parent=1 // pred_region
      %92 = dma.done [#allocation3], 128
    $region33: #{tpu_custom_call.1} parent=1 // pred_fallthru
      _
    // Predicated region
    $region34: #{tpu_custom_call.1} parent=1 // pred_check
      _
    $region35: #{tpu_custom_call.1} parent=1 // pred_check_branch
      %94 = sbr.rel (0) target = $region37
    $region36: #{tpu_custom_call.1} parent=1 // pred_region
      %96 = dma.done [#allocation6], 128
    $region37: #{tpu_custom_call.1} parent=1 // pred_fallthru
      _
    // Predicated region
    $region38: #{tpu_custom_call.1} parent=1 // pred_check
      _
    $region39: #{tpu_custom_call.1} parent=1 // pred_check_branch
      %98 = sbr.rel (0) target = $region41
    $region40: #{tpu_custom_call.1} parent=1 // pred_region
      %100 = dma.done [#allocation6], 128
    $region41: #{tpu_custom_call.1} parent=1 // pred_fallthru
      _
    // Predicated region
    $region42: #{tpu_custom_call.1} parent=1 // pred_check
      _
    $region43: #{tpu_custom_call.1} parent=1 // pred_check_branch
      %102 = sbr.rel (0) target = $region45
    $region44: #{tpu_custom_call.1} parent=1 // pred_region
      %104 = dma.done [#allocation9], 512
    $region45: #{tpu_custom_call.1} parent=1 // pred_fallthru
      _
    // Predicated region
    $region46: #{tpu_custom_call.1} parent=1 // pred_check
      _
    $region47: #{tpu_custom_call.1} parent=1 // pred_check_branch
      %106 = sbr.rel (0) target = $region49
    $region48: #{tpu_custom_call.1} parent=1 // pred_region
      %108 = dma.done [#allocation9], 256
    $region49: #{tpu_custom_call.1} parent=1 // pred_fallthru
      _
    // Predicated region
    $region50: #{tpu_custom_call.1} parent=1 // pred_check
      _
    $region51: #{tpu_custom_call.1} parent=1 // pred_check_branch
      %110 = sbr.rel (0) target = $region53
    $region52: #{tpu_custom_call.1} parent=1 // pred_region
      %112 = dma.done [#allocation12], 128
    $region53: #{tpu_custom_call.1} parent=1 // pred_fallthru
      _
    %v113 = vld [vmem:[#allocation2] sm:$0xff]
    %v114 = vld [vmem:[#allocation8] sm:$0xff]
    %v115 = vld [vmem:[#allocation8 + $0x8] sm:$0xff]
    %v116 = vld [vmem:[#allocation8 + $0x10] sm:$0xff]
    %v117 = vld [vmem:[#allocation8 + $0x18] sm:$0xff]
    %v118 = vld [vmem:[#allocation5] sm:$0xff]
    %v119 = vld [vmem:[#allocation10] sm:$0xff]
    %v120 = vld [vmem:[#allocation10 + $0x8] sm:$0xff]
    %vm121 = vcmask 130048
    %v123 = vsel %vm121, %v118, 0
    %125 = vmatpush.msra.mxu0 0.0
    %126 = vmatpush.msra.mxu0 0.0
    %127 = vmatpush.msra.mxu0 0.0
    %128 = vmatpush.msra.mxu0 0.0
    %129 = vmatpush.msra.mxu0 0.0
    %130 = vmatpush.msra.mxu0 0.0
    %131 = vmatpush.msra.mxu0 0.0
    %132 = vmatpush.msra.mxu0 0.0
    %133 = vmatpush.msra.mxu0 0.0
    %134 = vmatpush.msra.mxu0 0.0
    %135 = vmatpush.msra.mxu0 0.0
    %136 = vmatpush.msra.mxu0 0.0
    %137 = vmatpush.msra.mxu0 0.0
    %138 = vmatpush.msra.mxu0 0.0
    %139 = vmatpush.msra.mxu0 %v120
    %140 = vmatpush.msra.mxu0 %v119
    %141 = vmatmul.f32.gmra.mxu0 %v123
    %v142 = vpop.f32.mrf.mxu0
    %v143 = vadd.f32 0.0, %v142
    %144 = vdwg.mxu0
    %vm145 = vcmask 261120
    %v147 = vsel %vm145, %v113, 0
    %149 = vmatpush.msra.mxu0 0.0
    %150 = vmatpush.msra.mxu0 0.0
    %151 = vmatpush.msra.mxu0 0.0
    %152 = vmatpush.msra.mxu0 0.0
    %153 = vmatpush.msra.mxu0 0.0
    %154 = vmatpush.msra.mxu0 0.0
    %155 = vmatpush.msra.mxu0 0.0
    %156 = vmatpush.msra.mxu0 0.0
    %157 = vmatpush.msra.mxu0 0.0
    %158 = vmatpush.msra.mxu0 0.0
    %159 = vmatpush.msra.mxu0 0.0
    %160 = vmatpush.msra.mxu0 0.0
    %161 = vmatpush.msra.mxu0 %v117
    %162 = vmatpush.msra.mxu0 %v116
    %163 = vmatpush.msra.mxu0 %v115
    %164 = vmatpush.msra.mxu0 %v114
    %165 = vmatmul.f32.gmra.mxu0 %v147
    %v166 = vpop.f32.mrf.mxu0
    %v167 = vadd.f32 %v143, %v166
    %168 = vdwg.mxu0
    %v169 = vld [vmem:[#allocation7] sm:$0xff]
    %v170 = vld [vmem:[#allocation11] sm:$0xff]
    %vm171 = vcmask 64512
    %v173 = vsel %vm171, %v169, 0
    %175 = vmatpush.msra.mxu0 0.0
    %176 = vmatpush.msra.mxu0 0.0
    %177 = vmatpush.msra.mxu0 0.0
    %178 = vmatpush.msra.mxu0 0.0
    %179 = vmatpush.msra.mxu0 0.0
    %180 = vmatpush.msra.mxu0 0.0
    %181 = vmatpush.msra.mxu0 0.0
    %182 = vmatpush.msra.mxu0 0.0
    %183 = vmatpush.msra.mxu0 0.0
    %184 = vmatpush.msra.mxu0 0.0
    %185 = vmatpush.msra.mxu0 0.0
    %186 = vmatpush.msra.mxu0 0.0
    %187 = vmatpush.msra.mxu0 0.0
    %188 = vmatpush.msra.mxu0 0.0
    %189 = vmatpush.msra.mxu0 0.0
    %190 = vmatpush.msra.mxu0 %v170
    %191 = vmatmul.f32.gmra.mxu0 %v173
    %v192 = vpop.f32.mrf.mxu0
    %v193 = vadd.f32 0.0, %v192
    %194 = vdwg.mxu0
    %v195 = vadd.f32 %v167, %v193
    %v196 = vld [vmem:[%s6] sm:$0x1]
    %v198 = vperm.slane %v196, 0
    %v200 = vadd.f32 %v195, %v198
    %201 = vst [vmem:[#allocation13] sm:$0xff] %v200
    // Predicated region
    $region54: #{tpu_custom_call.1} parent=1 // pred_check
      _
    $region55: #{tpu_custom_call.1} parent=1 // pred_check_branch
      %203 = sbr.rel (0) target = $region57
    $region56: #{tpu_custom_call.1} parent=1 // pred_region
      %205 = vsyncadd [#allocation4], 0
      %s207 = sshll.u32 [#allocation13], 4
      %s208 = int_to_ptr.vmem [resolvable:$true] %s207
      %s209 = sshll.u32 %s7, 4
      %s210 = int_to_ptr.hbm [resolvable:$true] %s209
      %212 = dma.vmem_to_hbm [thread:$0]  %s208, 128, %s210, [#allocation4]
    $region57: #{tpu_custom_call.1} parent=1 // pred_fallthru
      _
    // Predicated region
    $region58: #{tpu_custom_call.1} parent=1 // pred_check
      _
    $region59: #{tpu_custom_call.1} parent=1 // pred_check_branch
      %214 = sbr.rel (0) target = $region61
    $region60: #{tpu_custom_call.1} parent=1 // pred_region
      %216 = dma.done [#allocation4], 128
    $region61: #{tpu_custom_call.1} parent=1 // pred_fallthru
      _
    %217 = vsyncpa [#allocation3], 1
    %218 = vsyncpa [#allocation6], 1
    %219 = vsyncpa [#allocation9], 1
    %220 = vsyncpa [#allocation12], 1
    %221 = vsyncpa [#allocation4], 1

</llo_original>
